<compile_context>
chip_gen: v7x
topology: tpu7x:2x2x1
jax: 0.10.0
libtpu: 0.0.40
codegen_flags: <defaults>
</compile_context>

<pallas_src>
import jax
import jax.numpy as jnp
from jax.experimental import pallas as pl
from jax.experimental.pallas import tpu as pltpu


_LANES = 128    # padded hidden width of every layer
_XROWS = 16     # augmented input rows: dim (<=15) features + zero pad + ones row
_MAX_BM = 2048  # cap on batch rows per grid step


def _mlp_kernel(x_ref, w0_ref, w_ref, o_ref):
    """Feature-major fused MLP.

    x_ref : (16, bm)   bf16 - rows[:dim] = x^T, last row = 1 (bias row)
    w0_ref: (128, 16)  bf16 - augmented fc1^T (bias folded into last column)
    w_ref : (384, 128) bf16 - augmented fc2^T..fc4^T (bias folded into col 127)
    o_ref : (2, bm)    f32  - log_softmax rows (class 0, class 1)
    """
    # fc1 (+ bias via the ones row) + ReLU; f32 accumulation on the MXU.
    h = jnp.dot(w0_ref[...], x_ref[...], preferred_element_type=jnp.float32)
    h = jnp.maximum(h, 0.0)

    # fc2, fc3 (+ReLU), fc4 (no ReLU) — uniform (128,128)@(128,bm) MXU matmuls.
    for layer in range(3):
        w = w_ref[layer * _LANES:(layer + 1) * _LANES, :]   # static slice, bf16
        z = jnp.dot(w, h.astype(jnp.bfloat16), preferred_element_type=jnp.float32)
        h = jnp.maximum(z, 0.0) if layer < 2 else z

    # 2-class log_softmax on rows 0/1. Batch lies along lanes -> fully
    # lane-dense VPU/EUP math, no cross-lane reduce, 2 transcendentals.
    l0 = h[0:1, :]
    l1 = h[1:2, :]
    m = jnp.maximum(l0, l1)
    lse = m + jnp.log(1.0 + jnp.exp(-jnp.abs(l0 - l1)))
    o_ref[0:1, :] = l0 - lse
    o_ref[1:2, :] = l1 - lse


def pack_params(params):
    """Pack fc1..fc4 into two bf16 slabs (done ONCE at init).

    Feature-major layout: each padded block holds W^T in [:out, :in], its bias
    in the last column, and 1.0 at [last, last] so a constant-1 activation row
    propagates through every layer. Zero padding keeps the math exact.
    Returns (w0_aug: (128,16) bf16, w_rest_aug: (384,128) bf16).
    """
    ws, bs = params[0::2], params[1::2]

    def aug_block(w, b, rows, cols):
        fan_in, fan_out = w.shape
        blk = jnp.zeros((rows, cols), jnp.float32)
        blk = blk.at[:fan_out, :fan_in].set(w.T)
        blk = blk.at[:fan_out, cols - 1].set(jnp.reshape(b, (fan_out,)))
        blk = blk.at[rows - 1, cols - 1].set(1.0)
        return blk

    w0 = aug_block(ws[0], bs[0], _LANES, _XROWS).astype(jnp.bfloat16)
    rest = jnp.concatenate(
        [aug_block(w, b, _LANES, _LANES) for w, b in zip(ws[1:], bs[1:])],
        axis=0).astype(jnp.bfloat16)
    return w0, rest


def _pick_block(batch):
    """Batch tile: multiple of 128, ~4 grid steps when possible, capped at 2048."""
    b128 = -(-batch // 128) * 128
    bm = min(_MAX_BM, max(128, (b128 // 4) // 128 * 128))
    b_pad = -(-b128 // bm) * bm
    return bm, b_pad


@jax.jit
def net_forward(x, packed_params):
    """Full Net forward (fc1..fc4 + log_softmax) fused into one Pallas kernel."""
    w0, w_rest = packed_params
    batch, dim = x.shape
    assert dim <= _XROWS - 1
    bm, b_pad = _pick_block(batch)

    # Narrow, bf16, feature-major input slab with the constant-1 bias row.
    x_aug = jnp.zeros((_XROWS, b_pad), jnp.bfloat16)
    x_aug = x_aug.at[:dim, :batch].set(x.astype(jnp.bfloat16).T)
    x_aug = x_aug.at[_XROWS - 1, :].set(1.0)

    out_t = pl.pallas_call(
        _mlp_kernel,
        out_shape=jax.ShapeDtypeStruct((2, b_pad), jnp.float32),
        grid_spec=pltpu.PrefetchScalarGridSpec(
            num_scalar_prefetch=0,
            grid=(b_pad // bm,),
            in_specs=[
                pl.BlockSpec((_XROWS, bm), lambda i: (0, i)),          # x tile
                pl.BlockSpec((_LANES, _XROWS), lambda i: (0, 0)),      # fc1 slab (resident)
                pl.BlockSpec((3 * _LANES, _LANES), lambda i: (0, 0)),  # fc2..4 slab (resident)
            ],
            out_specs=pl.BlockSpec((2, bm), lambda i: (0, i)),
        ),
        compiler_params=pltpu.CompilerParams(
            dimension_semantics=("parallel",)),
    )(x_aug, w0, w_rest)

    # (2, b_pad) -> (batch, 2); tiny wrapper-side transpose + slice.
    return out_t[:, :batch].T


def init_params(key, dim=10):
    """nn.Linear-style uniform(-1/sqrt(fan_in), 1/sqrt(fan_in)) init.

    Weights stored as (in_features, out_features) — transpose of PyTorch's
    (out, in) — so references compute x @ W directly.
    """
    sizes = [(dim, 50), (50, 100), (100, 50), (50, 2)]
    params = []
    for i, (fan_in, fan_out) in enumerate(sizes):
        kw, kb, key = jax.random.split(jax.random.fold_in(key, i), 3)
        bound = 1.0 / jnp.sqrt(jnp.float32(fan_in))
        w = jax.random.uniform(kw, (fan_in, fan_out), jnp.float32, -bound, bound)
        b = jax.random.uniform(kb, (1, fan_out), jnp.float32, -bound, bound)
        params.extend([w, b])
    return tuple(params)


def _reference_bf16(x, params):
    """Pure-JAX reference replicating the kernel numerics (bf16 dot operands
    and bf16-rounded biases, f32 accumulation / elementwise)."""
    h = x
    for i, (w, b) in enumerate(zip(params[0::2], params[1::2])):
        z = (jnp.dot(h.astype(jnp.bfloat16), w.astype(jnp.bfloat16),
                     preferred_element_type=jnp.float32)
             + b.astype(jnp.bfloat16).astype(jnp.float32))
        h = jnp.maximum(z, 0.0) if i < 3 else z
    return jax.nn.log_softmax(h, axis=-1)


def _reference_f32(x, params):
    """Full-f32 reference of the original PyTorch forward (loose sanity check;
    the kernel intentionally uses bf16 weights/activations on the MXU)."""
    w1, b1, w2, b2, w3, b3, w4, b4 = params
    h = jax.nn.relu(x @ w1 + b1)
    h = jax.nn.relu(h @ w2 + b2)
    h = jax.nn.relu(h @ w3 + b3)
    return jax.nn.log_softmax(h @ w4 + b4, axis=-1)


if __name__ == "__main__":
    dim = 10
    key = jax.random.PRNGKey(0)
    kx, kp = jax.random.split(key)
    params = init_params(kp, dim=dim)
    packed = pack_params(params)   # packed once, reused across forward calls

    # Small batch: single 128-row grid step.
    x_small = jax.random.normal(kx, (8, dim), jnp.float32)
    out_small = net_forward(x_small, packed)
    jax.block_until_ready(out_small)
    ref_small = _reference_bf16(x_small, params)
    assert out_small.shape == (8, 2)
    assert jnp.allclose(out_small, ref_small, atol=1e-4, rtol=1e-4), (
        float(jnp.max(jnp.abs(out_small - ref_small))))
    assert jnp.allclose(out_small, _reference_f32(x_small, params), atol=1e-1)

    # Larger, non-multiple-of-128 batch: exercises batch padding and a
    # multi-step "parallel" grid (v7x megacore / pipelined DMA path).
    x_big = jax.random.normal(jax.random.fold_in(kx, 1), (300, dim), jnp.float32)
    out_big = net_forward(x_big, packed)
    jax.block_until_ready(out_big)
    ref_big = _reference_bf16(x_big, params)
    assert out_big.shape == (300, 2)
    assert jnp.allclose(out_big, ref_big, atol=1e-4, rtol=1e-4), (
        float(jnp.max(jnp.abs(out_big - ref_big))))

    print("KERNEL_OK")
</pallas_src>

<mosaic_0001>
module attributes {stable_mosaic.version = 11 : i64} {
  func.func @_mlp_kernel(%arg0: i32, %arg1: memref<16x128xbf16, #tpu.memory_space<vmem>>, %arg2: memref<128x16xbf16, #tpu.memory_space<vmem>>, %arg3: memref<384x128xbf16, #tpu.memory_space<vmem>>, %arg4: memref<2x128xf32, #tpu.memory_space<vmem>>) attributes {dimension_semantics = [#tpu.dimension_semantics<parallel>], iteration_bounds = array<i64: 1>, scalar_prefetch = 0 : i64, scratch_operands = 0 : i64, tpu.core_type = #tpu.core_type<tc>, window_params = [{transform_indices = @transform_0, window_bounds = array<i64: 16, 128>}, {pipeline_mode = #tpu.pipeline_mode<synchronous>, transform_indices = @transform_1, window_bounds = array<i64: 128, 16>}, {pipeline_mode = #tpu.pipeline_mode<synchronous>, transform_indices = @transform_2, window_bounds = array<i64: 384, 128>}, {transform_indices = @transform_3, window_bounds = array<i64: 2, 128>}]} {
    %c0 = arith.constant 0 : index
    %c0_0 = arith.constant 0 : index
    %0 = vector.load %arg2[%c0, %c0_0] : memref<128x16xbf16, #tpu.memory_space<vmem>>, vector<128x16xbf16>
    %c0_1 = arith.constant 0 : index
    %c0_2 = arith.constant 0 : index
    %1 = vector.load %arg1[%c0_1, %c0_2] : memref<16x128xbf16, #tpu.memory_space<vmem>>, vector<16x128xbf16>
    %cst = arith.constant dense<0.000000e+00> : vector<128x128xf32>
    %2 = tpu.matmul %0, %1, %cst {dimension_numbers = #tpu.dot_dimension_numbers<[1], [0], [0], [1], [0, 0, 1, 1], [], []>} : vector<128x16xbf16>, vector<16x128xbf16>, vector<128x128xf32> -> vector<128x128xf32>
    %cst_3 = arith.constant 0.000000e+00 : f32
    %3 = vector.broadcast %cst_3 : f32 to vector<128x128xf32>
    %4 = arith.maximumf %2, %3 : vector<128x128xf32>
    %c0_4 = arith.constant 0 : index
    %c0_5 = arith.constant 0 : index
    %5 = vector.load %arg3[%c0_4, %c0_5] : memref<384x128xbf16, #tpu.memory_space<vmem>>, vector<128x128xbf16>
    %6 = arith.truncf %4 : vector<128x128xf32> to vector<128x128xbf16>
    %cst_6 = arith.constant dense<0.000000e+00> : vector<128x128xf32>
    %7 = tpu.matmul %5, %6, %cst_6 {dimension_numbers = #tpu.dot_dimension_numbers<[1], [0], [0], [1], [0, 0, 1, 1], [], []>} : vector<128x128xbf16>, vector<128x128xbf16>, vector<128x128xf32> -> vector<128x128xf32>
    %cst_7 = arith.constant 0.000000e+00 : f32
    %8 = vector.broadcast %cst_7 : f32 to vector<128x128xf32>
    %9 = arith.maximumf %7, %8 : vector<128x128xf32>
    %c128 = arith.constant 128 : index
    %c0_8 = arith.constant 0 : index
    %10 = vector.load %arg3[%c128, %c0_8] : memref<384x128xbf16, #tpu.memory_space<vmem>>, vector<128x128xbf16>
    %11 = arith.truncf %9 : vector<128x128xf32> to vector<128x128xbf16>
    %cst_9 = arith.constant dense<0.000000e+00> : vector<128x128xf32>
    %12 = tpu.matmul %10, %11, %cst_9 {dimension_numbers = #tpu.dot_dimension_numbers<[1], [0], [0], [1], [0, 0, 1, 1], [], []>} : vector<128x128xbf16>, vector<128x128xbf16>, vector<128x128xf32> -> vector<128x128xf32>
    %cst_10 = arith.constant 0.000000e+00 : f32
    %13 = vector.broadcast %cst_10 : f32 to vector<128x128xf32>
    %14 = arith.maximumf %12, %13 : vector<128x128xf32>
    %c256 = arith.constant 256 : index
    %c0_11 = arith.constant 0 : index
    %15 = vector.load %arg3[%c256, %c0_11] : memref<384x128xbf16, #tpu.memory_space<vmem>>, vector<128x128xbf16>
    %16 = arith.truncf %14 : vector<128x128xf32> to vector<128x128xbf16>
    %cst_12 = arith.constant dense<0.000000e+00> : vector<128x128xf32>
    %17 = tpu.matmul %15, %16, %cst_12 {dimension_numbers = #tpu.dot_dimension_numbers<[1], [0], [0], [1], [0, 0, 1, 1], [], []>} : vector<128x128xbf16>, vector<128x128xbf16>, vector<128x128xf32> -> vector<128x128xf32>
    %18 = vector.extract_strided_slice %17 {offsets = [0, 0], sizes = [1, 128], strides = [1, 1]} : vector<128x128xf32> to vector<1x128xf32>
    %19 = vector.extract_strided_slice %17 {offsets = [1, 0], sizes = [1, 128], strides = [1, 1]} : vector<128x128xf32> to vector<1x128xf32>
    %20 = arith.maximumf %18, %19 : vector<1x128xf32>
    %21 = arith.subf %18, %19 : vector<1x128xf32>
    %22 = math.absf %21 : vector<1x128xf32>
    %cst_13 = arith.constant 0.000000e+00 : f32
    %23 = vector.broadcast %cst_13 : f32 to vector<1x128xf32>
    %24 = arith.subf %23, %22 : vector<1x128xf32>
    %25 = math.exp %24 : vector<1x128xf32>
    %cst_14 = arith.constant 1.000000e+00 : f32
    %26 = vector.broadcast %cst_14 : f32 to vector<1x128xf32>
    %27 = arith.addf %26, %25 : vector<1x128xf32>
    %28 = math.log %27 : vector<1x128xf32>
    %29 = arith.addf %20, %28 : vector<1x128xf32>
    %30 = arith.subf %18, %29 : vector<1x128xf32>
    %c0_15 = arith.constant 0 : index
    %c0_16 = arith.constant 0 : index
    %31 = vector.load %arg4[%c0_15, %c0_16] : memref<2x128xf32, #tpu.memory_space<vmem>>, vector<1x128xf32>
    tpu.vector_store %arg4[%c0_15, %c0_16], %30 {strides = array<i32>} : memref<2x128xf32, #tpu.memory_space<vmem>>, vector<1x128xf32>,
    %32 = arith.subf %19, %29 : vector<1x128xf32>
    %c1 = arith.constant 1 : index
    %c0_17 = arith.constant 0 : index
    %33 = vector.load %arg4[%c1, %c0_17] : memref<2x128xf32, #tpu.memory_space<vmem>>, vector<1x128xf32>
    tpu.vector_store %arg4[%c1, %c0_17], %32 {strides = array<i32>} : memref<2x128xf32, #tpu.memory_space<vmem>>, vector<1x128xf32>,
    return
  }
  func.func @transform_0(%arg0: i32) -> (i32, i32) {
    %c0_i32 = arith.constant 0 : i32
    %c0_i32_0 = arith.constant 0 : i32
    return %c0_i32, %arg0 : i32, i32
  }
  func.func @transform_1(%arg0: i32) -> (i32, i32) {
    %c0_i32 = arith.constant 0 : i32
    %c0_i32_0 = arith.constant 0 : i32
    %c0_i32_1 = arith.constant 0 : i32
    return %c0_i32, %c0_i32_0 : i32, i32
  }
  func.func @transform_2(%arg0: i32) -> (i32, i32) {
    %c0_i32 = arith.constant 0 : i32
    %c0_i32_0 = arith.constant 0 : i32
    %c0_i32_1 = arith.constant 0 : i32
    return %c0_i32, %c0_i32_0 : i32, i32
  }
  func.func @transform_3(%arg0: i32) -> (i32, i32) {
    %c0_i32 = arith.constant 0 : i32
    %c0_i32_0 = arith.constant 0 : i32
    return %c0_i32, %arg0 : i32, i32
  }
}

</mosaic_0001>

<llo_original>
// kernel: net_forward.1
$region0: #{net_forward.1}
  #allocation0 [shape = 'u32[]', space=smem, size = 0x4, offset = 0x4, fixed_abs, tag = 'smem constant byte address 0x4 - core index']
  #allocation1 [shape = 'u32[144,128]{1,0:T(1,128)}', space=vmem, size = 0x12000, scoped, tag = 'internal scratch']
  %s0 = inlined_call_operand.vmem [shape: bf16[16,128], index: 0, kind: input, shape index: {}]
  %s1 = inlined_call_operand.vmem [shape: bf16[128,16], index: 1, kind: input, shape index: {}]
  %s2 = inlined_call_operand.hbm [shape: bf16[384,128], index: 2, kind: input, shape index: {}]
  %s3 = inlined_call_operand.vmem [shape: f32[2,128], index: 3, kind: output, shape index: {}]
  %s4 = sld [smem:[#allocation0]]
  $region26: #{net_forward.1} parent=0
    _
  %s6 = ssub.s32 1, %s4
  %s7 = scalar_select 0, %s6, %s4
  $region1: #{net_forward.1} parent=0
    #allocation2 [shape = 'u8[98304]{0}', space=vmem, size = 0x18000, scoped, tag = 'input window, operand 2, single buffered']
    #allocation3 [shape = 's32[1]{0}', space=sflag, size = 0x4, scoped, tag = 'scoped memory for net_forward.1']
    %8 = vsyncpa [#allocation3], 0
    // Predicated region
    $region2: #{net_forward.1} parent=1 // pred_check
      _
    $region3: #{net_forward.1} parent=1 // pred_check_branch
      %10 = sbr.rel (0) target = $region5
    $region4: #{net_forward.1} parent=1 // pred_region
      _
    $region5: #{net_forward.1} parent=1 // pred_fallthru
      _
    // Predicated region
    $region6: #{net_forward.1} parent=1 // pred_check
      _
    $region7: #{net_forward.1} parent=1 // pred_check_branch
      %12 = sbr.rel (0) target = $region9
    $region8: #{net_forward.1} parent=1 // pred_region
      _
    $region9: #{net_forward.1} parent=1 // pred_fallthru
      _
    // Predicated region
    $region10: #{net_forward.1} parent=1 // pred_check
      _
    $region11: #{net_forward.1} parent=1 // pred_check_branch
      %14 = sbr.rel (0) target = $region13
    $region12: #{net_forward.1} parent=1 // pred_region
      %s16 = ssub.s32 3072, 3072
      %17 = vsyncadd [#allocation3], %s16
      %s18 = sshll.u32 [#allocation2], 4
      %s19 = int_to_ptr.vmem [resolvable:$true] %s18
      %24 = dma.hbm_to_vmem [thread:$0]  %s2, 3072, %s19, [#allocation3], 64, 64, 4
    $region13: #{net_forward.1} parent=1 // pred_fallthru
      _
    // Predicated region
    $region14: #{net_forward.1} parent=1 // pred_check
      _
    $region15: #{net_forward.1} parent=1 // pred_check_branch
      %26 = sbr.rel (0) target = $region17
    $region16: #{net_forward.1} parent=1 // pred_region
      %27 = dma.done [#allocation3], 3072
    $region17: #{net_forward.1} parent=1 // pred_fallthru
      _
    %v29 = vld [vmem:[%s1] sm:$0xf]
    %v30 = vld [vmem:[%s1 + $0x4] sm:$0xf]
    %v31 = vld [vmem:[%s1 + $0x8] sm:$0xf]
    %v32 = vld [vmem:[%s1 + $0xc] sm:$0xf]
    %v33 = vld [vmem:[%s1 + $0x10] sm:$0xf]
    %v34 = vld [vmem:[%s1 + $0x14] sm:$0xf]
    %v35 = vld [vmem:[%s1 + $0x18] sm:$0xf]
    %v36 = vld [vmem:[%s1 + $0x1c] sm:$0xf]
    %v37 = vld [vmem:[%s1 + $0x20] sm:$0xf]
    %v38 = vld [vmem:[%s1 + $0x24] sm:$0xf]
    %v39 = vld [vmem:[%s1 + $0x28] sm:$0xf]
    %v40 = vld [vmem:[%s1 + $0x2c] sm:$0xf]
    %v41 = vld [vmem:[%s1 + $0x30] sm:$0xf]
    %v42 = vld [vmem:[%s1 + $0x34] sm:$0xf]
    %v43 = vld [vmem:[%s1 + $0x38] sm:$0xf]
    %v44 = vld [vmem:[%s1 + $0x3c] sm:$0xf]
    %v45 = vld [vmem:[%s0] sm:$0xf]
    %v46 = vld [vmem:[%s0 + $0x4] sm:$0xf]
    %v63 = vunpack.c.l.b16 %v29
    %v64 = vunpack.c.l.b16 %v30
    %v65 = vunpack.c.l.b16 %v31
    %v66 = vunpack.c.l.b16 %v32
    %v67 = vunpack.c.l.b16 %v33
    %v68 = vunpack.c.l.b16 %v34
    %v69 = vunpack.c.l.b16 %v35
    %v70 = vunpack.c.l.b16 %v36
    %v71 = vunpack.c.l.b16 %v37
    %v72 = vunpack.c.l.b16 %v38
    %v73 = vunpack.c.l.b16 %v39
    %v74 = vunpack.c.l.b16 %v40
    %v75 = vunpack.c.l.b16 %v41
    %v76 = vunpack.c.l.b16 %v42
    %v77 = vunpack.c.l.b16 %v43
    %v78 = vunpack.c.l.b16 %v44
    %v79 = vpack.c.b16 %v64, %v63
    %v80 = vpack.c.b16 %v66, %v65
    %v81 = vpack.c.b16 %v68, %v67
    %v82 = vpack.c.b16 %v70, %v69
    %v83 = vpack.c.b16 %v72, %v71
    %v84 = vpack.c.b16 %v74, %v73
    %v85 = vpack.c.b16 %v76, %v75
    %v86 = vpack.c.b16 %v78, %v77
    %v89 = vunpack.c.l.b16 %v45
    %v90 = vunpack.c.l.b16 %v46
    %v91 = vpack.c.b16 %v90, %v89
    %vm93 = vcmask 130048
    %v95 = vsel %vm93, %v79, 0
    %v98 = vsel %vm93, %v80, 0
    %v101 = vsel %vm93, %v81, 0
    %v104 = vsel %vm93, %v82, 0
    %v107 = vsel %vm93, %v83, 0
    %v110 = vsel %vm93, %v84, 0
    %v113 = vsel %vm93, %v85, 0
    %v116 = vsel %vm93, %v86, 0
    %118 = vmatprep.subr.bf16.mxu0 0
    %119 = vmatpush1.bf16.msra.mxu0 %v91
    %120 = vmatprep.subr.bf16.mxu0 0
    %121 = vmatpush1.bf16.msra.mxu0 0
    %122 = vmatprep.subr.bf16.mxu0 0
    %123 = vmatpush1.bf16.msra.mxu0 0
    %124 = vmatprep.subr.bf16.mxu0 0
    %125 = vmatpush1.bf16.msra.mxu0 0
    %126 = vmatprep.subr.bf16.mxu0 0
    %127 = vmatpush1.bf16.msra.mxu0 0
    %128 = vmatprep.subr.bf16.mxu0 0
    %129 = vmatpush1.bf16.msra.mxu0 0
    %130 = vmatprep.subr.bf16.mxu0 0
    %131 = vmatpush1.bf16.msra.mxu0 0
    %132 = vmatprep.subr.bf16.mxu0 0
    %133 = vmatpush1.bf16.msra.mxu0 0
    %134 = vmatprep.subr.bf16.mxu0 0
    %135 = vmatpush1.bf16.msra.mxu0 0
    %136 = vmatprep.subr.bf16.mxu0 0
    %137 = vmatpush1.bf16.msra.mxu0 0
    %138 = vmatprep.subr.bf16.mxu0 0
    %139 = vmatpush1.bf16.msra.mxu0 0
    %140 = vmatprep.subr.bf16.mxu0 0
    %141 = vmatpush1.bf16.msra.mxu0 0
    %142 = vmatprep.subr.bf16.mxu0 0
    %143 = vmatpush1.bf16.msra.mxu0 0
    %144 = vmatprep.subr.bf16.mxu0 0
    %145 = vmatpush1.bf16.msra.mxu0 0
    %146 = vmatprep.subr.bf16.mxu0 0
    %147 = vmatpush1.bf16.msra.mxu0 0
    %148 = vmatprep.subr.bf16.mxu0 0
    %149 = vmatpush1.bf16.msra.mxu0 0
    %150 = vmatprep.mubr.bf16.mxu0 0
    %151 = vmatmul.mubr.bf16.gmra.mrb[0].mxu0 %v95
    %v152 = vpop.f32.mrb[0].mxu0
    %v153 = vadd.f32 0.0, %v152
    %v154 = vpop.f32.mrb[0].mxu0
    %v155 = vpop.f32.mrb[0].mxu0
    %v156 = vadd.f32 0.0, %v155
    %v157 = vpop.f32.mrb[0].mxu0
    %158 = vmatprep.mubr.bf16.mxu0 0
    %159 = vmatmul.mubr.bf16.gmra.mrb[0].mxu0 %v98
    %v160 = vpop.f32.mrb[0].mxu0
    %v161 = vadd.f32 0.0, %v160
    %v162 = vpop.f32.mrb[0].mxu0
    %v163 = vpop.f32.mrb[0].mxu0
    %v164 = vadd.f32 0.0, %v163
    %v165 = vpop.f32.mrb[0].mxu0
    %166 = vmatprep.mubr.bf16.mxu0 0
    %167 = vmatmul.mubr.bf16.gmra.mrb[0].mxu0 %v101
    %v168 = vpop.f32.mrb[0].mxu0
    %v169 = vadd.f32 0.0, %v168
    %v170 = vpop.f32.mrb[0].mxu0
    %v171 = vpop.f32.mrb[0].mxu0
    %v172 = vadd.f32 0.0, %v171
    %v173 = vpop.f32.mrb[0].mxu0
    %174 = vmatprep.mubr.bf16.mxu0 0
    %175 = vmatmul.mubr.bf16.gmra.mrb[0].mxu0 %v104
    %v176 = vpop.f32.mrb[0].mxu0
    %v177 = vadd.f32 0.0, %v176
    %v178 = vpop.f32.mrb[0].mxu0
    %v179 = vpop.f32.mrb[0].mxu0
    %v180 = vadd.f32 0.0, %v179
    %v181 = vpop.f32.mrb[0].mxu0
    %182 = vmatprep.mubr.bf16.mxu0 0
    %183 = vmatmul.mubr.bf16.gmra.mrb[0].mxu0 %v107
    %v184 = vpop.f32.mrb[0].mxu0
    %v185 = vadd.f32 0.0, %v184
    %v186 = vpop.f32.mrb[0].mxu0
    %v187 = vpop.f32.mrb[0].mxu0
    %v188 = vadd.f32 0.0, %v187
    %v189 = vpop.f32.mrb[0].mxu0
    %190 = vmatprep.mubr.bf16.mxu0 0
    %191 = vmatmul.mubr.bf16.gmra.mrb[0].mxu0 %v110
    %v192 = vpop.f32.mrb[0].mxu0
    %v193 = vadd.f32 0.0, %v192
    %v194 = vpop.f32.mrb[0].mxu0
    %v195 = vpop.f32.mrb[0].mxu0
    %v196 = vadd.f32 0.0, %v195
    %v197 = vpop.f32.mrb[0].mxu0
    %198 = vmatprep.mubr.bf16.mxu0 0
    %199 = vmatmul.mubr.bf16.gmra.mrb[0].mxu0 %v113
    %v200 = vpop.f32.mrb[0].mxu0
    %v201 = vadd.f32 0.0, %v200
    %v202 = vpop.f32.mrb[0].mxu0
    %v203 = vpop.f32.mrb[0].mxu0
    %v204 = vadd.f32 0.0, %v203
    %v205 = vpop.f32.mrb[0].mxu0
    %206 = vmatprep.mubr.bf16.mxu0 0
    %207 = vmatmul.mubr.bf16.gmra.mrb[0].mxu0 %v116
    %v208 = vpop.f32.mrb[0].mxu0
    %v209 = vadd.f32 0.0, %v208
    %v210 = vpop.f32.mrb[0].mxu0
    %v211 = vpop.f32.mrb[0].mxu0
    %v212 = vadd.f32 0.0, %v211
    %v213 = vpop.f32.mrb[0].mxu0
    %214 = vdwg.mxu0
    %v215 = vmax.f32 %v153, 0.0
    %v216 = vmax.f32 %v156, 0.0
    %v217 = vmax.f32 %v161, 0.0
    %v218 = vmax.f32 %v164, 0.0
    %v219 = vmax.f32 %v169, 0.0
    %v220 = vmax.f32 %v172, 0.0
    %v221 = vmax.f32 %v177, 0.0
    %v222 = vmax.f32 %v180, 0.0
    %v223 = vmax.f32 %v185, 0.0
    %v224 = vmax.f32 %v188, 0.0
    %v225 = vmax.f32 %v193, 0.0
    %v226 = vmax.f32 %v196, 0.0
    %v227 = vmax.f32 %v201, 0.0
    %v228 = vmax.f32 %v204, 0.0
    %v229 = vmax.f32 %v209, 0.0
    %v230 = vmax.f32 %v212, 0.0
    %v231 = vld [vmem:[#allocation2] sm:$0xf]
    %v232 = vld [vmem:[#allocation2 + $0x4] sm:$0xf]
    %v233 = vld [vmem:[#allocation2 + $0x8] sm:$0xf]
    %v234 = vld [vmem:[#allocation2 + $0xc] sm:$0xf]
    %v235 = vld [vmem:[#allocation2 + $0x10] sm:$0xf]
    %v236 = vld [vmem:[#allocation2 + $0x14] sm:$0xf]
    %v237 = vld [vmem:[#allocation2 + $0x18] sm:$0xf]
    %v238 = vld [vmem:[#allocation2 + $0x1c] sm:$0xf]
    %v239 = vld [vmem:[#allocation2 + $0x20] sm:$0xf]
    %v240 = vld [vmem:[#allocation2 + $0x24] sm:$0xf]
    %v241 = vld [vmem:[#allocation2 + $0x28] sm:$0xf]
    %v242 = vld [vmem:[#allocation2 + $0x2c] sm:$0xf]
    %v243 = vld [vmem:[#allocation2 + $0x30] sm:$0xf]
    %v244 = vld [vmem:[#allocation2 + $0x34] sm:$0xf]
    %v245 = vld [vmem:[#allocation2 + $0x38] sm:$0xf]
    %v246 = vld [vmem:[#allocation2 + $0x3c] sm:$0xf]
    %v247 = vpack.c.bf16 %v216, %v215
    %v248 = vpack.c.bf16 %v218, %v217
    %v249 = vpack.c.bf16 %v220, %v219
    %v250 = vpack.c.bf16 %v222, %v221
    %v251 = vpack.c.bf16 %v224, %v223
    %v252 = vpack.c.bf16 %v226, %v225
    %v253 = vpack.c.bf16 %v228, %v227
    %v254 = vpack.c.bf16 %v230, %v229
    %v271 = vunpack.c.l.b16 %v231
    %v272 = vunpack.c.l.b16 %v232
    %v273 = vunpack.c.l.b16 %v233
    %v274 = vunpack.c.l.b16 %v234
    %v275 = vunpack.c.l.b16 %v235
    %v276 = vunpack.c.l.b16 %v236
    %v277 = vunpack.c.l.b16 %v237
    %v278 = vunpack.c.l.b16 %v238
    %v279 = vunpack.c.l.b16 %v239
    %v280 = vunpack.c.l.b16 %v240
    %v281 = vunpack.c.l.b16 %v241
    %v282 = vunpack.c.l.b16 %v242
    %v283 = vunpack.c.l.b16 %v243
    %v284 = vunpack.c.l.b16 %v244
    %v285 = vunpack.c.l.b16 %v245
    %v286 = vunpack.c.l.b16 %v246
    %v287 = vpack.c.b16 %v272, %v271
    %v288 = vpack.c.b16 %v274, %v273
    %v289 = vpack.c.b16 %v276, %v275
    %v290 = vpack.c.b16 %v278, %v277
    %v291 = vpack.c.b16 %v280, %v279
    %v292 = vpack.c.b16 %v282, %v281
    %v293 = vpack.c.b16 %v284, %v283
    %v294 = vpack.c.b16 %v286, %v285
    %303 = vmatprep.subr.bf16.mxu0 0
    %304 = vmatpush1.bf16.msra.mxu0 %v247
    %305 = vmatprep.subr.bf16.mxu0 0
    %306 = vmatpush1.bf16.msra.mxu0 %v248
    %307 = vmatprep.subr.bf16.mxu0 0
    %308 = vmatpush1.bf16.msra.mxu0 %v249
    %309 = vmatprep.subr.bf16.mxu0 0
    %310 = vmatpush1.bf16.msra.mxu0 %v250
    %311 = vmatprep.subr.bf16.mxu0 0
    %312 = vmatpush1.bf16.msra.mxu0 %v251
    %313 = vmatprep.subr.bf16.mxu0 0
    %314 = vmatpush1.bf16.msra.mxu0 %v252
    %315 = vmatprep.subr.bf16.mxu0 0
    %316 = vmatpush1.bf16.msra.mxu0 %v253
    %317 = vmatprep.subr.bf16.mxu0 0
    %318 = vmatpush1.bf16.msra.mxu0 %v254
    %319 = vmatprep.subr.bf16.mxu0 0
    %320 = vmatpush1.bf16.msra.mxu0 0
    %321 = vmatprep.subr.bf16.mxu0 0
    %322 = vmatpush1.bf16.msra.mxu0 0
    %323 = vmatprep.subr.bf16.mxu0 0
    %324 = vmatpush1.bf16.msra.mxu0 0
    %325 = vmatprep.subr.bf16.mxu0 0
    %326 = vmatpush1.bf16.msra.mxu0 0
    %327 = vmatprep.subr.bf16.mxu0 0
    %328 = vmatpush1.bf16.msra.mxu0 0
    %329 = vmatprep.subr.bf16.mxu0 0
    %330 = vmatpush1.bf16.msra.mxu0 0
    %331 = vmatprep.subr.bf16.mxu0 0
    %332 = vmatpush1.bf16.msra.mxu0 0
    %333 = vmatprep.subr.bf16.mxu0 0
    %334 = vmatpush1.bf16.msra.mxu0 0
    %335 = vmatprep.mubr.bf16.mxu0 0
    %336 = vmatmul.mubr.bf16.gmra.mrb[0].mxu0 %v287
    %v337 = vpop.f32.mrb[0].mxu0
    %v338 = vadd.f32 0.0, %v337
    %v339 = vpop.f32.mrb[0].mxu0
    %v340 = vpop.f32.mrb[0].mxu0
    %v341 = vadd.f32 0.0, %v340
    %v342 = vpop.f32.mrb[0].mxu0
    %343 = vmatprep.mubr.bf16.mxu0 0
    %344 = vmatmul.mubr.bf16.gmra.mrb[0].mxu0 %v288
    %v345 = vpop.f32.mrb[0].mxu0
    %v346 = vadd.f32 0.0, %v345
    %v347 = vpop.f32.mrb[0].mxu0
    %v348 = vpop.f32.mrb[0].mxu0
    %v349 = vadd.f32 0.0, %v348
    %v350 = vpop.f32.mrb[0].mxu0
    %351 = vmatprep.mubr.bf16.mxu0 0
    %352 = vmatmul.mubr.bf16.gmra.mrb[0].mxu0 %v289
    %v353 = vpop.f32.mrb[0].mxu0
    %v354 = vadd.f32 0.0, %v353
    %v355 = vpop.f32.mrb[0].mxu0
    %v356 = vpop.f32.mrb[0].mxu0
    %v357 = vadd.f32 0.0, %v356
    %v358 = vpop.f32.mrb[0].mxu0
    %359 = vmatprep.mubr.bf16.mxu0 0
    %360 = vmatmul.mubr.bf16.gmra.mrb[0].mxu0 %v290
    %v361 = vpop.f32.mrb[0].mxu0
    %v362 = vadd.f32 0.0, %v361
    %v363 = vpop.f32.mrb[0].mxu0
    %v364 = vpop.f32.mrb[0].mxu0
    %v365 = vadd.f32 0.0, %v364
    %v366 = vpop.f32.mrb[0].mxu0
    %367 = vmatprep.mubr.bf16.mxu0 0
    %368 = vmatmul.mubr.bf16.gmra.mrb[0].mxu0 %v291
    %v369 = vpop.f32.mrb[0].mxu0
    %v370 = vadd.f32 0.0, %v369
    %v371 = vpop.f32.mrb[0].mxu0
    %v372 = vpop.f32.mrb[0].mxu0
    %v373 = vadd.f32 0.0, %v372
    %v374 = vpop.f32.mrb[0].mxu0
    %375 = vmatprep.mubr.bf16.mxu0 0
    %376 = vmatmul.mubr.bf16.gmra.mrb[0].mxu0 %v292
    %v377 = vpop.f32.mrb[0].mxu0
    %v378 = vadd.f32 0.0, %v377
    %v379 = vpop.f32.mrb[0].mxu0
    %v380 = vpop.f32.mrb[0].mxu0
    %v381 = vadd.f32 0.0, %v380
    %v382 = vpop.f32.mrb[0].mxu0
    %383 = vmatprep.mubr.bf16.mxu0 0
    %384 = vmatmul.mubr.bf16.gmra.mrb[0].mxu0 %v293
    %v385 = vpop.f32.mrb[0].mxu0
    %v386 = vadd.f32 0.0, %v385
    %v387 = vpop.f32.mrb[0].mxu0
    %v388 = vpop.f32.mrb[0].mxu0
    %v389 = vadd.f32 0.0, %v388
    %v390 = vpop.f32.mrb[0].mxu0
    %391 = vmatprep.mubr.bf16.mxu0 0
    %392 = vmatmul.mubr.bf16.gmra.mrb[0].mxu0 %v294
    %v393 = vpop.f32.mrb[0].mxu0
    %v394 = vadd.f32 0.0, %v393
    %v395 = vpop.f32.mrb[0].mxu0
    %v396 = vpop.f32.mrb[0].mxu0
    %v397 = vadd.f32 0.0, %v396
    %v398 = vpop.f32.mrb[0].mxu0
    %399 = vdwg.mxu0
    %v400 = vmax.f32 %v338, 0.0
    %v401 = vmax.f32 %v341, 0.0
    %v402 = vmax.f32 %v346, 0.0
    %v403 = vmax.f32 %v349, 0.0
    %v404 = vmax.f32 %v354, 0.0
    %v405 = vmax.f32 %v357, 0.0
    %v406 = vmax.f32 %v362, 0.0
    %v407 = vmax.f32 %v365, 0.0
    %v408 = vmax.f32 %v370, 0.0
    %v409 = vmax.f32 %v373, 0.0
    %v410 = vmax.f32 %v378, 0.0
    %v411 = vmax.f32 %v381, 0.0
    %v412 = vmax.f32 %v386, 0.0
    %v413 = vmax.f32 %v389, 0.0
    %v414 = vmax.f32 %v394, 0.0
    %v415 = vmax.f32 %v397, 0.0
    %v416 = vld [vmem:[#allocation2 + $0x40] sm:$0xf]
    %v417 = vld [vmem:[#allocation2 + $0x44] sm:$0xf]
    %v418 = vld [vmem:[#allocation2 + $0x48] sm:$0xf]
    %v419 = vld [vmem:[#allocation2 + $0x4c] sm:$0xf]
    %v420 = vld [vmem:[#allocation2 + $0x50] sm:$0xf]
    %v421 = vld [vmem:[#allocation2 + $0x54] sm:$0xf]
    %v422 = vld [vmem:[#allocation2 + $0x58] sm:$0xf]
    %v423 = vld [vmem:[#allocation2 + $0x5c] sm:$0xf]
    %v424 = vld [vmem:[#allocation2 + $0x60] sm:$0xf]
    %v425 = vld [vmem:[#allocation2 + $0x64] sm:$0xf]
    %v426 = vld [vmem:[#allocation2 + $0x68] sm:$0xf]
    %v427 = vld [vmem:[#allocation2 + $0x6c] sm:$0xf]
    %v428 = vld [vmem:[#allocation2 + $0x70] sm:$0xf]
    %v429 = vld [vmem:[#allocation2 + $0x74] sm:$0xf]
    %v430 = vld [vmem:[#allocation2 + $0x78] sm:$0xf]
    %v431 = vld [vmem:[#allocation2 + $0x7c] sm:$0xf]
    %v432 = vpack.c.bf16 %v401, %v400
    %v433 = vpack.c.bf16 %v403, %v402
    %v434 = vpack.c.bf16 %v405, %v404
    %v435 = vpack.c.bf16 %v407, %v406
    %v436 = vpack.c.bf16 %v409, %v408
    %v437 = vpack.c.bf16 %v411, %v410
    %v438 = vpack.c.bf16 %v413, %v412
    %v439 = vpack.c.bf16 %v415, %v414
    %v456 = vunpack.c.l.b16 %v416
    %v457 = vunpack.c.l.b16 %v417
    %v458 = vunpack.c.l.b16 %v418
    %v459 = vunpack.c.l.b16 %v419
    %v460 = vunpack.c.l.b16 %v420
    %v461 = vunpack.c.l.b16 %v421
    %v462 = vunpack.c.l.b16 %v422
    %v463 = vunpack.c.l.b16 %v423
    %v464 = vunpack.c.l.b16 %v424
    %v465 = vunpack.c.l.b16 %v425
    %v466 = vunpack.c.l.b16 %v426
    %v467 = vunpack.c.l.b16 %v427
    %v468 = vunpack.c.l.b16 %v428
    %v469 = vunpack.c.l.b16 %v429
    %v470 = vunpack.c.l.b16 %v430
    %v471 = vunpack.c.l.b16 %v431
    %v472 = vpack.c.b16 %v457, %v456
    %v473 = vpack.c.b16 %v459, %v458
    %v474 = vpack.c.b16 %v461, %v460
    %v475 = vpack.c.b16 %v463, %v462
    %v476 = vpack.c.b16 %v465, %v464
    %v477 = vpack.c.b16 %v467, %v466
    %v478 = vpack.c.b16 %v469, %v468
    %v479 = vpack.c.b16 %v471, %v470
    %488 = vmatprep.subr.bf16.mxu0 0
    %489 = vmatpush1.bf16.msra.mxu0 %v432
    %490 = vmatprep.subr.bf16.mxu0 0
    %491 = vmatpush1.bf16.msra.mxu0 %v433
    %492 = vmatprep.subr.bf16.mxu0 0
    %493 = vmatpush1.bf16.msra.mxu0 %v434
    %494 = vmatprep.subr.bf16.mxu0 0
    %495 = vmatpush1.bf16.msra.mxu0 %v435
    %496 = vmatprep.subr.bf16.mxu0 0
    %497 = vmatpush1.bf16.msra.mxu0 %v436
    %498 = vmatprep.subr.bf16.mxu0 0
    %499 = vmatpush1.bf16.msra.mxu0 %v437
    %500 = vmatprep.subr.bf16.mxu0 0
    %501 = vmatpush1.bf16.msra.mxu0 %v438
    %502 = vmatprep.subr.bf16.mxu0 0
    %503 = vmatpush1.bf16.msra.mxu0 %v439
    %504 = vmatprep.subr.bf16.mxu0 0
    %505 = vmatpush1.bf16.msra.mxu0 0
    %506 = vmatprep.subr.bf16.mxu0 0
    %507 = vmatpush1.bf16.msra.mxu0 0
    %508 = vmatprep.subr.bf16.mxu0 0
    %509 = vmatpush1.bf16.msra.mxu0 0
    %510 = vmatprep.subr.bf16.mxu0 0
    %511 = vmatpush1.bf16.msra.mxu0 0
    %512 = vmatprep.subr.bf16.mxu0 0
    %513 = vmatpush1.bf16.msra.mxu0 0
    %514 = vmatprep.subr.bf16.mxu0 0
    %515 = vmatpush1.bf16.msra.mxu0 0
    %516 = vmatprep.subr.bf16.mxu0 0
    %517 = vmatpush1.bf16.msra.mxu0 0
    %518 = vmatprep.subr.bf16.mxu0 0
    %519 = vmatpush1.bf16.msra.mxu0 0
    %520 = vmatprep.mubr.bf16.mxu0 0
    %521 = vmatmul.mubr.bf16.gmra.mrb[0].mxu0 %v472
    %v522 = vpop.f32.mrb[0].mxu0
    %v523 = vadd.f32 0.0, %v522
    %v524 = vpop.f32.mrb[0].mxu0
    %v525 = vpop.f32.mrb[0].mxu0
    %v526 = vadd.f32 0.0, %v525
    %v527 = vpop.f32.mrb[0].mxu0
    %528 = vmatprep.mubr.bf16.mxu0 0
    %529 = vmatmul.mubr.bf16.gmra.mrb[0].mxu0 %v473
    %v530 = vpop.f32.mrb[0].mxu0
    %v531 = vadd.f32 0.0, %v530
    %v532 = vpop.f32.mrb[0].mxu0
    %v533 = vpop.f32.mrb[0].mxu0
    %v534 = vadd.f32 0.0, %v533
    %v535 = vpop.f32.mrb[0].mxu0
    %536 = vmatprep.mubr.bf16.mxu0 0
    %537 = vmatmul.mubr.bf16.gmra.mrb[0].mxu0 %v474
    %v538 = vpop.f32.mrb[0].mxu0
    %v539 = vadd.f32 0.0, %v538
    %v540 = vpop.f32.mrb[0].mxu0
    %v541 = vpop.f32.mrb[0].mxu0
    %v542 = vadd.f32 0.0, %v541
    %v543 = vpop.f32.mrb[0].mxu0
    %544 = vmatprep.mubr.bf16.mxu0 0
    %545 = vmatmul.mubr.bf16.gmra.mrb[0].mxu0 %v475
    %v546 = vpop.f32.mrb[0].mxu0
    %v547 = vadd.f32 0.0, %v546
    %v548 = vpop.f32.mrb[0].mxu0
    %v549 = vpop.f32.mrb[0].mxu0
    %v550 = vadd.f32 0.0, %v549
    %v551 = vpop.f32.mrb[0].mxu0
    %552 = vmatprep.mubr.bf16.mxu0 0
    %553 = vmatmul.mubr.bf16.gmra.mrb[0].mxu0 %v476
    %v554 = vpop.f32.mrb[0].mxu0
    %v555 = vadd.f32 0.0, %v554
    %v556 = vpop.f32.mrb[0].mxu0
    %v557 = vpop.f32.mrb[0].mxu0
    %v558 = vadd.f32 0.0, %v557
    %v559 = vpop.f32.mrb[0].mxu0
    %560 = vmatprep.mubr.bf16.mxu0 0
    %561 = vmatmul.mubr.bf16.gmra.mrb[0].mxu0 %v477
    %v562 = vpop.f32.mrb[0].mxu0
    %v563 = vadd.f32 0.0, %v562
    %v564 = vpop.f32.mrb[0].mxu0
    %v565 = vpop.f32.mrb[0].mxu0
    %v566 = vadd.f32 0.0, %v565
    %v567 = vpop.f32.mrb[0].mxu0
    %568 = vmatprep.mubr.bf16.mxu0 0
    %569 = vmatmul.mubr.bf16.gmra.mrb[0].mxu0 %v478
    %v570 = vpop.f32.mrb[0].mxu0
    %v571 = vadd.f32 0.0, %v570
    %v572 = vpop.f32.mrb[0].mxu0
    %v573 = vpop.f32.mrb[0].mxu0
    %v574 = vadd.f32 0.0, %v573
    %v575 = vpop.f32.mrb[0].mxu0
    %576 = vmatprep.mubr.bf16.mxu0 0
    %577 = vmatmul.mubr.bf16.gmra.mrb[0].mxu0 %v479
    %v578 = vpop.f32.mrb[0].mxu0
    %v579 = vadd.f32 0.0, %v578
    %v580 = vpop.f32.mrb[0].mxu0
    %v581 = vpop.f32.mrb[0].mxu0
    %v582 = vadd.f32 0.0, %v581
    %v583 = vpop.f32.mrb[0].mxu0
    %584 = vdwg.mxu0
    %v585 = vmax.f32 %v523, 0.0
    %v586 = vmax.f32 %v526, 0.0
    %v587 = vmax.f32 %v531, 0.0
    %v588 = vmax.f32 %v534, 0.0
    %v589 = vmax.f32 %v539, 0.0
    %v590 = vmax.f32 %v542, 0.0
    %v591 = vmax.f32 %v547, 0.0
    %v592 = vmax.f32 %v550, 0.0
    %v593 = vmax.f32 %v555, 0.0
    %v594 = vmax.f32 %v558, 0.0
    %v595 = vmax.f32 %v563, 0.0
    %v596 = vmax.f32 %v566, 0.0
    %v597 = vmax.f32 %v571, 0.0
    %v598 = vmax.f32 %v574, 0.0
    %v599 = vmax.f32 %v579, 0.0
    %v600 = vmax.f32 %v582, 0.0
    %v601 = vld [vmem:[#allocation2 + $0x80] sm:$0xf]
    %v602 = vld [vmem:[#allocation2 + $0x84] sm:$0xf]
    %v603 = vld [vmem:[#allocation2 + $0x88] sm:$0xf]
    %v604 = vld [vmem:[#allocation2 + $0x8c] sm:$0xf]
    %v605 = vld [vmem:[#allocation2 + $0x90] sm:$0xf]
    %v606 = vld [vmem:[#allocation2 + $0x94] sm:$0xf]
    %v607 = vld [vmem:[#allocation2 + $0x98] sm:$0xf]
    %v608 = vld [vmem:[#allocation2 + $0x9c] sm:$0xf]
    %v609 = vld [vmem:[#allocation2 + $0xa0] sm:$0xf]
    %v610 = vld [vmem:[#allocation2 + $0xa4] sm:$0xf]
    %v611 = vld [vmem:[#allocation2 + $0xa8] sm:$0xf]
    %v612 = vld [vmem:[#allocation2 + $0xac] sm:$0xf]
    %v613 = vld [vmem:[#allocation2 + $0xb0] sm:$0xf]
    %v614 = vld [vmem:[#allocation2 + $0xb4] sm:$0xf]
    %v615 = vld [vmem:[#allocation2 + $0xb8] sm:$0xf]
    %v616 = vld [vmem:[#allocation2 + $0xbc] sm:$0xf]
    %v617 = vpack.c.bf16 %v586, %v585
    %v618 = vpack.c.bf16 %v588, %v587
    %v619 = vpack.c.bf16 %v590, %v589
    %v620 = vpack.c.bf16 %v592, %v591
    %v621 = vpack.c.bf16 %v594, %v593
    %v622 = vpack.c.bf16 %v596, %v595
    %v623 = vpack.c.bf16 %v598, %v597
    %v624 = vpack.c.bf16 %v600, %v599
    %v641 = vunpack.c.l.b16 %v601
    %v642 = vunpack.c.l.b16 %v602
    %v643 = vunpack.c.l.b16 %v603
    %v644 = vunpack.c.l.b16 %v604
    %v645 = vunpack.c.l.b16 %v605
    %v646 = vunpack.c.l.b16 %v606
    %v647 = vunpack.c.l.b16 %v607
    %v648 = vunpack.c.l.b16 %v608
    %v649 = vunpack.c.l.b16 %v609
    %v650 = vunpack.c.l.b16 %v610
    %v651 = vunpack.c.l.b16 %v611
    %v652 = vunpack.c.l.b16 %v612
    %v653 = vunpack.c.l.b16 %v613
    %v654 = vunpack.c.l.b16 %v614
    %v655 = vunpack.c.l.b16 %v615
    %v656 = vunpack.c.l.b16 %v616
    %v657 = vpack.c.b16 %v642, %v641
    %v658 = vpack.c.b16 %v644, %v643
    %v659 = vpack.c.b16 %v646, %v645
    %v660 = vpack.c.b16 %v648, %v647
    %v661 = vpack.c.b16 %v650, %v649
    %v662 = vpack.c.b16 %v652, %v651
    %v663 = vpack.c.b16 %v654, %v653
    %v664 = vpack.c.b16 %v656, %v655
    %673 = vmatprep.subr.bf16.mxu0 0
    %674 = vmatpush1.bf16.msra.mxu0 %v617
    %675 = vmatprep.subr.bf16.mxu0 0
    %676 = vmatpush1.bf16.msra.mxu0 %v618
    %677 = vmatprep.subr.bf16.mxu0 0
    %678 = vmatpush1.bf16.msra.mxu0 %v619
    %679 = vmatprep.subr.bf16.mxu0 0
    %680 = vmatpush1.bf16.msra.mxu0 %v620
    %681 = vmatprep.subr.bf16.mxu0 0
    %682 = vmatpush1.bf16.msra.mxu0 %v621
    %683 = vmatprep.subr.bf16.mxu0 0
    %684 = vmatpush1.bf16.msra.mxu0 %v622
    %685 = vmatprep.subr.bf16.mxu0 0
    %686 = vmatpush1.bf16.msra.mxu0 %v623
    %687 = vmatprep.subr.bf16.mxu0 0
    %688 = vmatpush1.bf16.msra.mxu0 %v624
    %689 = vmatprep.subr.bf16.mxu0 0
    %690 = vmatpush1.bf16.msra.mxu0 0
    %691 = vmatprep.subr.bf16.mxu0 0
    %692 = vmatpush1.bf16.msra.mxu0 0
    %693 = vmatprep.subr.bf16.mxu0 0
    %694 = vmatpush1.bf16.msra.mxu0 0
    %695 = vmatprep.subr.bf16.mxu0 0
    %696 = vmatpush1.bf16.msra.mxu0 0
    %697 = vmatprep.subr.bf16.mxu0 0
    %698 = vmatpush1.bf16.msra.mxu0 0
    %699 = vmatprep.subr.bf16.mxu0 0
    %700 = vmatpush1.bf16.msra.mxu0 0
    %701 = vmatprep.subr.bf16.mxu0 0
    %702 = vmatpush1.bf16.msra.mxu0 0
    %703 = vmatprep.subr.bf16.mxu0 0
    %704 = vmatpush1.bf16.msra.mxu0 0
    %705 = vmatprep.mubr.bf16.mxu0 0
    %706 = vmatmul.mubr.bf16.gmra.mrb[0].mxu0 %v657
    %v707 = vpop.f32.mrb[0].mxu0
    %v708 = vadd.f32 0.0, %v707
    %v709 = vpop.f32.mrb[0].mxu0
    %v710 = vpop.f32.mrb[0].mxu0
    %v711 = vpop.f32.mrb[0].mxu0
    %712 = vmatprep.mubr.bf16.mxu0 0
    %713 = vmatmul.mubr.bf16.gmra.mrb[0].mxu0 %v658
    %v714 = vpop.f32.mrb[0].mxu0
    %v715 = vpop.f32.mrb[0].mxu0
    %v716 = vpop.f32.mrb[0].mxu0
    %v717 = vpop.f32.mrb[0].mxu0
    %718 = vmatprep.mubr.bf16.mxu0 0
    %719 = vmatmul.mubr.bf16.gmra.mrb[0].mxu0 %v659
    %v720 = vpop.f32.mrb[0].mxu0
    %v721 = vpop.f32.mrb[0].mxu0
    %v722 = vpop.f32.mrb[0].mxu0
    %v723 = vpop.f32.mrb[0].mxu0
    %724 = vmatprep.mubr.bf16.mxu0 0
    %725 = vmatmul.mubr.bf16.gmra.mrb[0].mxu0 %v660
    %v726 = vpop.f32.mrb[0].mxu0
    %v727 = vpop.f32.mrb[0].mxu0
    %v728 = vpop.f32.mrb[0].mxu0
    %v729 = vpop.f32.mrb[0].mxu0
    %730 = vmatprep.mubr.bf16.mxu0 0
    %731 = vmatmul.mubr.bf16.gmra.mrb[0].mxu0 %v661
    %v732 = vpop.f32.mrb[0].mxu0
    %v733 = vpop.f32.mrb[0].mxu0
    %v734 = vpop.f32.mrb[0].mxu0
    %v735 = vpop.f32.mrb[0].mxu0
    %736 = vmatprep.mubr.bf16.mxu0 0
    %737 = vmatmul.mubr.bf16.gmra.mrb[0].mxu0 %v662
    %v738 = vpop.f32.mrb[0].mxu0
    %v739 = vpop.f32.mrb[0].mxu0
    %v740 = vpop.f32.mrb[0].mxu0
    %v741 = vpop.f32.mrb[0].mxu0
    %742 = vmatprep.mubr.bf16.mxu0 0
    %743 = vmatmul.mubr.bf16.gmra.mrb[0].mxu0 %v663
    %v744 = vpop.f32.mrb[0].mxu0
    %v745 = vpop.f32.mrb[0].mxu0
    %v746 = vpop.f32.mrb[0].mxu0
    %v747 = vpop.f32.mrb[0].mxu0
    %748 = vmatprep.mubr.bf16.mxu0 0
    %749 = vmatmul.mubr.bf16.gmra.mrb[0].mxu0 %v664
    %v750 = vpop.f32.mrb[0].mxu0
    %v751 = vpop.f32.mrb[0].mxu0
    %v752 = vpop.f32.mrb[0].mxu0
    %v753 = vpop.f32.mrb[0].mxu0
    %754 = vdwg.mxu0
    %v756 = vrot.slane %v708, 1
    %v758 = vmax.f32 %v708, %v756
    %v759 = vsub.f32 %v708, %v756
    %v760 = vand.u32 2147483647, %v759
    %v761 = vsub.f32 0.0, %v760
    %v762 = vmul.f32 %v761, 1.442695
    %v763 = vpow.pop %v762
    %v764 = vadd.f32 %v763, 1.0
    %v765 = vlog2.pop %v764
    %v766 = vmul.f32 %v765, 0.6931472
    %v767 = vadd.f32 %v758, %v766
    %v768 = vsub.f32 %v708, %v767
    %769 = vst [vmem:[%s3] sm:$0x1] %v768
    %v771 = vrot.slane %v767, 7
    %v773 = vsub.f32 %v708, %v771
    %774 = vst [vmem:[%s3] sm:$0x2] %v773
    // Predicated region
    $region18: #{net_forward.1} parent=1 // pred_check
      _
    $region19: #{net_forward.1} parent=1 // pred_check_branch
      %776 = sbr.rel (0) target = $region21
    $region20: #{net_forward.1} parent=1 // pred_region
      _
    $region21: #{net_forward.1} parent=1 // pred_fallthru
      _
    // Predicated region
    $region22: #{net_forward.1} parent=1 // pred_check
      _
    $region23: #{net_forward.1} parent=1 // pred_check_branch
      %778 = sbr.rel (0) target = $region25
    $region24: #{net_forward.1} parent=1 // pred_region
      _
    $region25: #{net_forward.1} parent=1 // pred_fallthru
      _
    %779 = vsyncpa [#allocation3], 1

</llo_original>
